<compile_context>
chip_gen: v6e
topology: v6e:2x2x1
jax: 0.10.0
libtpu: 0.0.40
codegen_flags: <defaults>
</compile_context>

<pallas_src>
import functools

import jax
import jax.numpy as jnp
from jax import lax
from jax.experimental import pallas as pl
from jax.experimental.pallas import tpu as pltpu


def _round_up(x, m):
    return ((x + m - 1) // m) * m


def _vmem_capacity_bytes():
    """Physical per-core VMEM bytes, with a conservative (v7x-safe) fallback."""
    try:
        info = pltpu.get_tpu_info()
        for name in ("vmem_capacity_bytes", "vmem_size_bytes", "vmem_bytes"):
            cap = getattr(info, name, None)
            if cap:
                return int(cap)
    except Exception:
        pass
    return 64 * 2**20


def _vmem_estimate(tq, nf_pad, fs, c, h, itemsize, resident):
    """Rough per-step VMEM working set in bytes (lane-padded, double-buffered)."""
    f32 = 4
    fs_l = _round_up(fs, 128)
    c_l = _round_up(c, 128)
    feat = 2 * (h if resident else 1) * nf_pad * fs_l * itemsize
    lab = 2 * nf_pad * c_l * itemsize
    scratch = 2 * tq * nf_pad * f32          # best-logit + normalizer carriers
    temps = 6 * tq * nf_pad * f32            # s, exp, masks, select temporaries
    out = 2 * 8 * max(tq, 128) * f32         # lane-dense (1, 1, tq) output block
    return feat + lab + scratch + temps + out


def _pick_plan(nf, fs, c, h, itemsize, target):
    """Choose (anchor tile rows, resident-feature-slab?) for the VMEM target."""
    nf8 = _round_up(nf, 8)

    def best_tq(resident):
        for tq in (1024, 512, 256, 128, 64, 32, 16, 8):
            if tq > nf8:
                continue
            if _vmem_estimate(tq, _round_up(nf8, tq), fs, c, h, itemsize,
                              resident) <= target:
                return tq
        return None

    tq_r, tq_s = best_tq(True), best_tq(False)
    # Prefer the resident slab (single feature HBM load) unless streaming buys
    # a substantially larger (>=128-row) anchor tile.
    if tq_r is not None and (tq_s is None or tq_r >= min(128, tq_s)):
        return tq_r, True
    if tq_s is not None:
        return tq_s, False
    return 8, False


def _mscl_kernel(feat_ref, lab_ref, out_ref, best_sc, z_sc, *,
                 loss_scale, nf_real):
    """One (anchor-tile, head) grid step.

    feat_ref : resident (H*NF_pad, Fs) or streamed (1, NF_pad, Fs); rows are
               already L2-normalized and scaled by temperature**-0.5, so the
               matmul output is dp / temperature directly.
    lab_ref  : (NF_pad, C) per-row multi-hot labels (zero rows = padding).
    out_ref  : (1, 1, tq)  per-anchor-row loss for the current tile (lane dense).
    best_sc  : (tq, NF_pad) running max-over-heads logits (argmax carrier).
    z_sc     : (tq, NF_pad) normalizer m + log(row_sum) of the winning head.
    """
    i = pl.program_id(0)
    h = pl.program_id(1)
    num_heads = pl.num_programs(1)

    tq = out_ref.shape[-1]
    nf_pad = lab_ref.shape[0]
    n_col_pad = nf_pad - nf_real
    row0 = pl.multiple_of(i * tq, tq)

    # ---- per-head logits s[r, k] = <f_r, f_k> / T (single MXU call) --------
    if len(feat_ref.shape) == 3:                       # streamed (1, NF_pad, Fs)
        keys = feat_ref[0]
        q = feat_ref[0, pl.ds(row0, tq), :]
    else:                                              # resident (H*NF_pad, Fs)
        koff = pl.multiple_of(h * nf_pad, nf_pad)
        qoff = pl.multiple_of(h * nf_pad + i * tq, tq)
        keys = feat_ref[pl.ds(koff, nf_pad), :]
        q = feat_ref[pl.ds(qoff, tq), :]

    s = lax.dot_general(q, keys, (((1,), (1,)), ((), ())),
                        preferred_element_type=jnp.float32)      # (tq, NF_pad)

    col = lax.broadcasted_iota(jnp.int32, (tq, nf_pad), 1)
    row = lax.broadcasted_iota(jnp.int32, (tq, nf_pad), 0) + row0
    not_self = col != row
    if n_col_pad:
        valid = not_self & (col < nf_real)
    else:
        valid = not_self

    # Row max includes the self term (as in the reference); it cancels in the
    # log-prob.  Exactly one EUP exp pass; self / padded columns are excluded
    # with an exact mask (no analytic-cancellation hazard under bf16).
    m = jnp.max(s, axis=-1, keepdims=True)                        # (tq, 1)
    e = jnp.where(valid, jnp.exp(s - m), 0.0)
    z = m + jnp.log(jnp.sum(e, axis=-1, keepdims=True))           # (tq, 1)

    # ---- carried argmax over heads: best logits + that head's normalizer ----
    @pl.when(h == 0)
    def _init():
        best_sc[...] = s
        z_sc[...] = jnp.broadcast_to(z, (tq, nf_pad))

    @pl.when(h > 0)
    def _merge():
        better = s > best_sc[...]      # strict '>' => first max wins (torch.argmax)
        best_sc[...] = jnp.where(better, s, best_sc[...])
        z_sc[...] = jnp.where(better, z, z_sc[...])

    # ---- finalize: positives mask, mean log-prob, lane-dense per-row loss ---
    @pl.when(h == num_heads - 1)
    def _finalize():
        lab_all = lab_ref[...]                                    # (NF_pad, C)
        lab_q = lab_ref[pl.ds(row0, tq), :]                       # (tq, C)
        lmat = lax.dot_general(lab_q, lab_all, (((1,), (1,)), ((), ())),
                               preferred_element_type=jnp.float32)
        # Padded key rows have zero labels => lmat == 0 => excluded.
        pos = jnp.where((lmat > 0.0) & not_self, 1.0, 0.0)
        lp = best_sc[...] - z_sc[...]          # gathered log-prob of winning head
        num = jnp.sum(pos * lp, axis=-1)                          # (tq,)
        den = jnp.sum(pos, axis=-1)                               # (tq,)
        # Exact divide: 0/0 -> NaN rows are dropped by the isfinite filter in
        # the wrapper (matches `loss[loss.isfinite()].mean()`).
        out_ref[...] = (loss_scale * (num / den))[None, None, :]


def multihead_supcon_loss_no_negatives(features, labels, *, temperature=0.07,
                                       base_temperature=0.07, num_heads=1,
                                       block_q=None,
                                       matmul_dtype=jnp.bfloat16,
                                       vmem_target_bytes=None,
                                       resident_features=None):
    """features: (B, V, E), labels: (B, C) multi-hot. Returns scalar loss.

    matmul_dtype=jnp.bfloat16 (default) uses the native MXU path with f32
    accumulation; pass jnp.float32 for bit-faithful argmax tie-breaking vs the
    f32 reference.
    """
    B, V, E = features.shape
    assert E % num_heads == 0, "embedding_size must be divisible by num_heads"
    C = labels.shape[-1]
    NF = B * V
    H = num_heads
    Fs = E // H

    itemsize = jnp.dtype(matmul_dtype).itemsize
    cap = _vmem_capacity_bytes()
    if vmem_target_bytes is None:
        # ~90 MiB on 128 MiB chips (v5e/v6e), ~45 MiB on v7x's 64 MiB.
        vmem_target_bytes = int(0.70 * cap)

    nf8 = _round_up(NF, 8)
    if block_q is None:
        tq, resident = _pick_plan(NF, Fs, C, H, itemsize, vmem_target_bytes)
    else:
        tq = max(8, _round_up(min(block_q, nf8), 8))
        resident = (_vmem_estimate(tq, _round_up(nf8, tq), Fs, C, H, itemsize,
                                   True) <= vmem_target_bytes)
    if resident_features is not None:
        resident = bool(resident_features)
    tq = min(tq, nf8)
    NF_pad = _round_up(nf8, tq)
    num_tiles = NF_pad // tq
    est = _vmem_estimate(tq, NF_pad, Fs, C, H, itemsize, resident)
    vmem_limit = int(min(cap, max(est + (8 << 20), 32 * 2**20)))

    # One XLA pass over the features: L2-normalize each head (eps semantics of
    # F.normalize) and fold temperature**-0.5 into BOTH operands so the
    # in-kernel matmul yields dp / T directly; cast to bf16 (default) so HBM
    # traffic and the VMEM key slab are halved.  Row order is b*V+v (pure
    # reshape); the loss is invariant to a consistent row permutation.
    inv_sqrt_t = float(1.0 / (float(temperature) ** 0.5))
    f = features.astype(jnp.float32).reshape(NF, H, Fs)
    ss = jnp.sum(f * f, axis=-1, keepdims=True)
    fn = (f * (lax.rsqrt(jnp.maximum(ss, 1e-24)) * inv_sqrt_t)).astype(matmul_dtype)
    fhn = jnp.transpose(fn, (1, 0, 2))                 # (H, NF, Fs); free if H == 1
    if NF_pad != NF:
        fhn = jnp.pad(fhn, ((0, 0), (0, NF_pad - NF), (0, 0)))

    if resident:
        # Whole multi-head slab resident: constant-index full-array block, the
        # head is sliced in-kernel at an NF_pad-aligned sublane offset.
        feat_in = fhn.reshape(H * NF_pad, Fs)
        feat_spec = pl.BlockSpec((H * NF_pad, Fs), lambda i, h: (0, 0))
    else:
        # Per-head slab streamed with BlockSpec double-buffering.
        feat_in = fhn
        feat_spec = pl.BlockSpec((1, NF_pad, Fs), lambda i, h: (h, 0, 0))

    lab_rows = jnp.repeat(labels.astype(matmul_dtype), V, axis=0)   # (NF, C)
    if NF_pad != NF:
        lab_rows = jnp.pad(lab_rows, ((0, NF_pad - NF), (0, 0)))

    kernel = functools.partial(
        _mscl_kernel,
        loss_scale=-(float(temperature) / float(base_temperature)),
        nf_real=NF)

    out = pl.pallas_call(
        kernel,
        out_shape=jax.ShapeDtypeStruct((num_tiles, 1, tq), jnp.float32),
        grid_spec=pltpu.PrefetchScalarGridSpec(
            num_scalar_prefetch=0,
            grid=(num_tiles, H),
            in_specs=[feat_spec,
                      pl.BlockSpec((NF_pad, C), lambda i, h: (0, 0))],
            out_specs=pl.BlockSpec((1, 1, tq), lambda i, h: (i, 0, 0)),
            scratch_shapes=[pltpu.VMEM((tq, NF_pad), jnp.float32),
                            pltpu.VMEM((tq, NF_pad), jnp.float32)]),
        compiler_params=pltpu.CompilerParams(
            dimension_semantics=("parallel", "arbitrary"),
            vmem_limit_bytes=vmem_limit),
    )(feat_in, lab_rows)

    # Tiny finite-filtered mean over NF scalars, reduced outside the kernel.
    loss_rows = out.reshape(NF_pad)[:NF]
    finite = jnp.isfinite(loss_rows)
    return jnp.sum(jnp.where(finite, loss_rows, 0.0)) / jnp.sum(
        finite.astype(jnp.float32))


def _reference(features, labels, temperature, base_temperature, num_heads):
    """Direct JAX translation of the PyTorch forward (cubic, for checking)."""
    B, V, E = features.shape
    NF = B * V
    Fs = E // num_heads
    hp = lax.Precision.HIGHEST
    mask = (jnp.matmul(labels, labels.T, precision=hp) > 0).astype(jnp.float32)
    feats = jnp.transpose(features, (1, 0, 2)).reshape(NF, E)
    f = feats.reshape(NF, num_heads, Fs)
    f = f / jnp.maximum(jnp.sqrt(jnp.sum(f * f, -1, keepdims=True)), 1e-12)
    flat = f.reshape(-1, Fs)
    dpf = jnp.matmul(flat, flat.T, precision=hp).reshape(NF, num_heads, NF, num_heads)
    dp = jnp.diagonal(jnp.transpose(dpf, (0, 2, 1, 3)), axis1=2, axis2=3)  # (NF,NF,H)
    heads = jnp.argmax(dp, axis=-1)
    dp = dp / temperature
    h1 = jnp.broadcast_to(heads[:, :, None, None], (NF, NF, 1, NF))
    D = jnp.broadcast_to(dp[:, :, None, :], (NF, NF, NF, num_heads))
    D = jnp.transpose(D, (0, 2, 3, 1))                                     # (NF,NF,H,NF)
    G = jnp.squeeze(jnp.take_along_axis(D, h1, axis=2), axis=2)            # (NF,NF,NF)
    logits = G - jnp.max(G, axis=2, keepdims=True)
    maskr = jnp.tile(mask, (V, V))
    logits_mask = 1.0 - jnp.eye(NF)
    maskr = maskr * logits_mask
    exp_logits = jnp.exp(logits) * logits_mask[:, None, :]
    log_prob = jnp.diagonal(logits, axis1=1, axis2=2) - jnp.log(exp_logits.sum(2))
    mlpp = (maskr * log_prob).sum(1) / maskr.sum(1)
    loss = -(temperature / base_temperature) * mlpp
    fin = jnp.isfinite(loss)
    return jnp.sum(jnp.where(fin, loss, 0.0)) / jnp.sum(fin)


if __name__ == "__main__":
    TEMP, BASE_TEMP = 0.07, 0.07
    key = jax.random.PRNGKey(0)

    configs = [
        # (B, V, E, C, H, extra kwargs)
        (4, 2, 32, 6, 2, {}),                               # resident, multi-head
        (4, 2, 32, 6, 1, {}),                               # single head
        (3, 2, 32, 6, 2, {}),                               # NF=6 -> padded to 8
        (8, 2, 32, 6, 2, {"block_q": 8}),                   # multi anchor tile (grid 2x2)
        (4, 2, 32, 6, 2, {"resident_features": False}),     # streamed per-head path
    ]
    for (B, V, E, C, H, kw) in configs:
        key, kf, kl = jax.random.split(key, 3)
        features = jax.random.normal(kf, (B, V, E), dtype=jnp.float32)
        labels = (jax.random.uniform(kl, (B, C)) > 0.5).astype(jnp.float32)

        ref = jax.block_until_ready(_reference(features, labels, TEMP, BASE_TEMP, H))

        # f32 precision path: must match the cubic reference tightly.
        loss32 = multihead_supcon_loss_no_negatives(
            features, labels, temperature=TEMP, base_temperature=BASE_TEMP,
            num_heads=H, matmul_dtype=jnp.float32, **kw)
        loss32 = jax.block_until_ready(loss32)
        if not jnp.allclose(loss32, ref, rtol=5e-3, atol=5e-3):
            raise AssertionError(
                f"f32 mismatch (B={B},V={V},H={H},{kw}): kernel={loss32} ref={ref}")

        # Default bf16 fast path: must run, be finite, and be in the right
        # ballpark (bf16 can legitimately flip near-tied head argmaxes).
        loss16 = multihead_supcon_loss_no_negatives(
            features, labels, temperature=TEMP, base_temperature=BASE_TEMP,
            num_heads=H, **kw)
        loss16 = jax.block_until_ready(loss16)
        if not bool(jnp.isfinite(loss16)):
            raise AssertionError(f"bf16 loss not finite (B={B},V={V},H={H},{kw})")
        if not jnp.allclose(loss16, ref, rtol=0.25, atol=1.0):
            raise AssertionError(
                f"bf16 loss far from reference (B={B},V={V},H={H},{kw}): "
                f"kernel={loss16} ref={ref}")

    print("KERNEL_OK")
</pallas_src>

<mosaic_0001>
module attributes {stable_mosaic.version = 11 : i64} {
  func.func @_mscl_kernel(%arg0: i32, %arg1: i32, %arg2: memref<16x16xf32, #tpu.memory_space<vmem>>, %arg3: memref<8x6xf32, #tpu.memory_space<vmem>>, %arg4: memref<1x1x8xf32, #tpu.memory_space<vmem>>, %arg5: memref<8x8xf32, #tpu.memory_space<vmem>>, %arg6: memref<8x8xf32, #tpu.memory_space<vmem>>) attributes {dimension_semantics = [#tpu.dimension_semantics<parallel>, #tpu.dimension_semantics<arbitrary>], iteration_bounds = array<i64: 1, 2>, scalar_prefetch = 0 : i64, scratch_operands = 2 : i64, tpu.core_type = #tpu.core_type<tc>, window_params = [{pipeline_mode = #tpu.pipeline_mode<synchronous>, transform_indices = @transform_0, window_bounds = array<i64: 16, 16>}, {pipeline_mode = #tpu.pipeline_mode<synchronous>, transform_indices = @transform_1, window_bounds = array<i64: 8, 6>}, {transform_indices = @transform_2, window_bounds = array<i64: 1, 1, 8>}]} {
    %c8_i32 = arith.constant 8 : i32
    %0 = arith.muli %arg0, %c8_i32 : i32
    %1 = tpu.assume_multiple %0, 8 : i32
    %c8_i32_0 = arith.constant 8 : i32
    %2 = arith.muli %arg1, %c8_i32_0 : i32
    %3 = tpu.assume_multiple %2, 8 : i32
    %c8_i32_1 = arith.constant 8 : i32
    %4 = arith.muli %arg1, %c8_i32_1 : i32
    %c8_i32_2 = arith.constant 8 : i32
    %5 = arith.muli %arg0, %c8_i32_2 : i32
    %6 = arith.addi %4, %5 : i32
    %7 = tpu.assume_multiple %6, 8 : i32
    %8 = arith.index_cast %3 : i32 to index
    %c0 = arith.constant 0 : index
    %9 = vector.load %arg2[%8, %c0] : memref<16x16xf32, #tpu.memory_space<vmem>>, vector<8x16xf32>
    %10 = arith.index_cast %7 : i32 to index
    %c0_3 = arith.constant 0 : index
    %11 = vector.load %arg2[%10, %c0_3] : memref<16x16xf32, #tpu.memory_space<vmem>>, vector<8x16xf32>
    %cst = arith.constant dense<0.000000e+00> : vector<8x8xf32>
    %12 = tpu.matmul %11, %9, %cst {dimension_numbers = #tpu.dot_dimension_numbers<[1], [1], [0], [0], [0, 0, 1, 0], [], []>} : vector<8x16xf32>, vector<8x16xf32>, vector<8x8xf32> -> vector<8x8xf32>
    %13 = tpu.iota {dimensions = array<i32: 1>} : vector<8x8xi32>
    %14 = tpu.iota {dimensions = array<i32: 0>} : vector<8x8xi32>
    %15 = vector.broadcast %1 : i32 to vector<8x8xi32>
    %16 = arith.addi %14, %15 : vector<8x8xi32>
    %17 = arith.cmpi ne, %13, %16 : vector<8x8xi32>
    %cst_4 = arith.constant dense<0xFF800000> : vector<8xf32>
    %18 = vector.multi_reduction <maximumf>, %12, %cst_4 [1] : vector<8x8xf32> to vector<8xf32>
    %19 = vector.shape_cast %18 : vector<8xf32> to vector<8x1xf32>
    %20 = vector.broadcast %19 : vector<8x1xf32> to vector<8x8xf32>
    %21 = arith.subf %12, %20 : vector<8x8xf32>
    %22 = math.exp %21 : vector<8x8xf32>
    %cst_5 = arith.constant 0.000000e+00 : f32
    %23 = vector.broadcast %cst_5 : f32 to vector<8x8xf32>
    %24 = arith.select %17, %22, %23 : vector<8x8xi1>, vector<8x8xf32>
    %cst_6 = arith.constant dense<0.000000e+00> : vector<8xf32>
    %25 = vector.multi_reduction <add>, %24, %cst_6 [1] : vector<8x8xf32> to vector<8xf32>
    %26 = vector.shape_cast %25 : vector<8xf32> to vector<8x1xf32>
    %27 = math.log %26 : vector<8x1xf32>
    %28 = arith.addf %19, %27 : vector<8x1xf32>
    %c0_i32 = arith.constant 0 : i32
    %29 = arith.cmpi eq, %arg1, %c0_i32 : i32
    %30 = arith.extui %29 : i1 to i32
    %c0_i32_7 = arith.constant 0 : i32
    %31 = arith.cmpi ne, %30, %c0_i32_7 : i32
    scf.if %31 {
      %c0_11 = arith.constant 0 : index
      %c0_12 = arith.constant 0 : index
      %38 = vector.load %arg5[%c0_11, %c0_12] : memref<8x8xf32, #tpu.memory_space<vmem>>, vector<8x8xf32>
      tpu.vector_store %arg5[%c0_11, %c0_12], %12 {strides = array<i32>} : memref<8x8xf32, #tpu.memory_space<vmem>>, vector<8x8xf32>,
      %39 = vector.shape_cast %28 : vector<8x1xf32> to vector<8x1xf32>
      %40 = vector.broadcast %39 : vector<8x1xf32> to vector<8x8xf32>
      %c0_13 = arith.constant 0 : index
      %c0_14 = arith.constant 0 : index
      %41 = vector.load %arg6[%c0_13, %c0_14] : memref<8x8xf32, #tpu.memory_space<vmem>>, vector<8x8xf32>
      tpu.vector_store %arg6[%c0_13, %c0_14], %40 {strides = array<i32>} : memref<8x8xf32, #tpu.memory_space<vmem>>, vector<8x8xf32>,
    } else {
    }
    %c0_i32_8 = arith.constant 0 : i32
    %32 = arith.cmpi sgt, %arg1, %c0_i32_8 : i32
    %33 = arith.extui %32 : i1 to i32
    %c0_i32_9 = arith.constant 0 : i32
    %34 = arith.cmpi ne, %33, %c0_i32_9 : i32
    scf.if %34 {
      %c0_11 = arith.constant 0 : index
      %c0_12 = arith.constant 0 : index
      %38 = vector.load %arg5[%c0_11, %c0_12] : memref<8x8xf32, #tpu.memory_space<vmem>>, vector<8x8xf32>
      %39 = arith.cmpf ogt, %12, %38 : vector<8x8xf32>
      %c0_13 = arith.constant 0 : index
      %c0_14 = arith.constant 0 : index
      %40 = vector.load %arg5[%c0_13, %c0_14] : memref<8x8xf32, #tpu.memory_space<vmem>>, vector<8x8xf32>
      %41 = arith.select %39, %12, %40 : vector<8x8xi1>, vector<8x8xf32>
      %c0_15 = arith.constant 0 : index
      %c0_16 = arith.constant 0 : index
      %42 = vector.load %arg5[%c0_15, %c0_16] : memref<8x8xf32, #tpu.memory_space<vmem>>, vector<8x8xf32>
      tpu.vector_store %arg5[%c0_15, %c0_16], %41 {strides = array<i32>} : memref<8x8xf32, #tpu.memory_space<vmem>>, vector<8x8xf32>,
      %c0_17 = arith.constant 0 : index
      %c0_18 = arith.constant 0 : index
      %43 = vector.load %arg6[%c0_17, %c0_18] : memref<8x8xf32, #tpu.memory_space<vmem>>, vector<8x8xf32>
      %44 = vector.shape_cast %28 : vector<8x1xf32> to vector<8x1xf32>
      %45 = vector.broadcast %44 : vector<8x1xf32> to vector<8x8xf32>
      %46 = arith.select %39, %45, %43 : vector<8x8xi1>, vector<8x8xf32>
      %c0_19 = arith.constant 0 : index
      %c0_20 = arith.constant 0 : index
      %47 = vector.load %arg6[%c0_19, %c0_20] : memref<8x8xf32, #tpu.memory_space<vmem>>, vector<8x8xf32>
      tpu.vector_store %arg6[%c0_19, %c0_20], %46 {strides = array<i32>} : memref<8x8xf32, #tpu.memory_space<vmem>>, vector<8x8xf32>,
    } else {
    }
    %c1_i32 = arith.constant 1 : i32
    %35 = arith.cmpi eq, %arg1, %c1_i32 : i32
    %36 = arith.extui %35 : i1 to i32
    %c0_i32_10 = arith.constant 0 : i32
    %37 = arith.cmpi ne, %36, %c0_i32_10 : i32
    scf.if %37 {
      %c0_11 = arith.constant 0 : index
      %c0_12 = arith.constant 0 : index
      %38 = vector.load %arg3[%c0_11, %c0_12] : memref<8x6xf32, #tpu.memory_space<vmem>>, vector<8x6xf32>
      %39 = arith.index_cast %1 : i32 to index
      %c0_13 = arith.constant 0 : index
      %40 = vector.load %arg3[%39, %c0_13] : memref<8x6xf32, #tpu.memory_space<vmem>>, vector<8x6xf32>
      %cst_14 = arith.constant dense<0.000000e+00> : vector<8x8xf32>
      %41 = tpu.matmul %40, %38, %cst_14 {dimension_numbers = #tpu.dot_dimension_numbers<[1], [1], [0], [0], [0, 0, 1, 0], [], []>} : vector<8x6xf32>, vector<8x6xf32>, vector<8x8xf32> -> vector<8x8xf32>
      %cst_15 = arith.constant 0.000000e+00 : f32
      %42 = vector.broadcast %cst_15 : f32 to vector<8x8xf32>
      %43 = arith.cmpf ogt, %41, %42 : vector<8x8xf32>
      %44 = arith.andi %43, %17 : vector<8x8xi1>
      %cst_16 = arith.constant 1.000000e+00 : f32
      %cst_17 = arith.constant 0.000000e+00 : f32
      %45 = vector.broadcast %cst_16 : f32 to vector<8x8xf32>
      %46 = vector.broadcast %cst_17 : f32 to vector<8x8xf32>
      %47 = arith.select %44, %45, %46 : vector<8x8xi1>, vector<8x8xf32>
      %c0_18 = arith.constant 0 : index
      %c0_19 = arith.constant 0 : index
      %48 = vector.load %arg5[%c0_18, %c0_19] : memref<8x8xf32, #tpu.memory_space<vmem>>, vector<8x8xf32>
      %c0_20 = arith.constant 0 : index
      %c0_21 = arith.constant 0 : index
      %49 = vector.load %arg6[%c0_20, %c0_21] : memref<8x8xf32, #tpu.memory_space<vmem>>, vector<8x8xf32>
      %50 = arith.subf %48, %49 : vector<8x8xf32>
      %51 = arith.mulf %47, %50 : vector<8x8xf32>
      %cst_22 = arith.constant dense<0.000000e+00> : vector<8xf32>
      %52 = vector.multi_reduction <add>, %51, %cst_22 [1] : vector<8x8xf32> to vector<8xf32>
      %cst_23 = arith.constant dense<0.000000e+00> : vector<8xf32>
      %53 = vector.multi_reduction <add>, %47, %cst_23 [1] : vector<8x8xf32> to vector<8xf32>
      %54 = arith.divf %52, %53 : vector<8xf32>
      %cst_24 = arith.constant -1.000000e+00 : f32
      %55 = vector.broadcast %cst_24 : f32 to vector<8xf32>
      %56 = arith.mulf %55, %54 : vector<8xf32>
      %57 = vector.shape_cast %56 : vector<8xf32> to vector<1x1x8xf32>
      %c0_25 = arith.constant 0 : index
      %c0_26 = arith.constant 0 : index
      %c0_27 = arith.constant 0 : index
      %58 = vector.load %arg4[%c0_25, %c0_26, %c0_27] : memref<1x1x8xf32, #tpu.memory_space<vmem>>, vector<1x1x8xf32>
      tpu.vector_store %arg4[%c0_25, %c0_26, %c0_27], %57 {strides = array<i32>} : memref<1x1x8xf32, #tpu.memory_space<vmem>>, vector<1x1x8xf32>,
    } else {
    }
    return
  }
  func.func @transform_0(%arg0: i32, %arg1: i32) -> (i32, i32) {
    %c0_i32 = arith.constant 0 : i32
    %c0_i32_0 = arith.constant 0 : i32
    %c0_i32_1 = arith.constant 0 : i32
    return %c0_i32, %c0_i32_0 : i32, i32
  }
  func.func @transform_1(%arg0: i32, %arg1: i32) -> (i32, i32) {
    %c0_i32 = arith.constant 0 : i32
    %c0_i32_0 = arith.constant 0 : i32
    %c0_i32_1 = arith.constant 0 : i32
    return %c0_i32, %c0_i32_0 : i32, i32
  }
  func.func @transform_2(%arg0: i32, %arg1: i32) -> (i32, i32, i32) {
    %c0_i32 = arith.constant 0 : i32
    %c0_i32_0 = arith.constant 0 : i32
    %c0_i32_1 = arith.constant 0 : i32
    return %arg0, %c0_i32, %c0_i32_0 : i32, i32, i32
  }
}

</mosaic_0001>

<llo_original>
// kernel: tpu_custom_call.1
$region0: #{tpu_custom_call.1}
  #allocation0 [shape = 'u32[]', space=smem, size = 0x4, offset = 0x4, fixed_abs, tag = 'smem constant byte address 0x4 - core index']
  #allocation1 [shape = 'u32[144,128]{1,0:T(1,128)}', space=vmem, size = 0x12000, scoped, tag = 'internal scratch']
  #allocation2 [shape = 'f32[8,8]{1,0:T(8,128)}', space=vmem, size = 0x1000, scoped, tag = 'scratch operand']
  #allocation3 [shape = 'f32[8,8]{1,0:T(8,128)}', space=vmem, size = 0x1000, scoped, tag = 'scratch operand']
  %s0 = inlined_call_operand.hbm [shape: f32[16,16], index: 0, kind: input, shape index: {}]
  %s1 = inlined_call_operand.hbm [shape: f32[8,6], index: 1, kind: input, shape index: {}]
  %s2 = inlined_call_operand.hbm [shape: f32[1,1,8], index: 2, kind: output, shape index: {}]
  %s3 = sld [smem:[#allocation0]]
  $region61: #{tpu_custom_call.1} parent=0
    _
  %s5 = ssub.s32 1, %s3
  %s6 = scalar_select 0, %s5, %s3
  $region1: #{tpu_custom_call.1} parent=0
    #allocation4 [shape = 'u8[8192]{0}', space=vmem, size = 0x2000, scoped, tag = 'input window, operand 0, single buffered']
    #allocation5 [shape = 's32[2]{0}', space=sflag, size = 0x8, scoped, tag = 'scoped memory for tpu_custom_call.1']
    #allocation6 [shape = 's32[2]{0}', space=sflag, size = 0x8, scoped, tag = 'scoped memory for tpu_custom_call.1']
    #allocation7 [shape = 'u8[4096]{0}', space=vmem, size = 0x1000, scoped, tag = 'input window, operand 1, single buffered']
    #allocation8 [shape = 's32[1]{0}', space=sflag, size = 0x4, scoped, tag = 'scoped memory for tpu_custom_call.1']
    #allocation9 [shape = 'u8[512]{0}', space=vmem, size = 0x400, scoped, tag = 'output window, operand 0, single buffered']
    %7 = vsyncpa [#allocation5], 0
    %8 = vsyncpa [#allocation8], 0
    %9 = vsyncpa [#allocation6], 0
    loop: start=0, step=1, limit=4
    $region2: #{tpu_custom_call.1} parent=1 // loop_pre_header
      _
    $region3: #{tpu_custom_call.1} parent=1 // loop_header
      %s11 = sphi 0, %s15
      %p12 = scmp.ge.s32.totalorder %s11, 4
      %s18 = sphi 0, %s30
      %s19 = sphi 0, %s26
      %s20 = sphi 0, %s18
      %s21 = sphi 0, %s19
      %s22 = sphi 0, %s20
      %s23 = sphi 0, %s21
      %s31 = sphi 0, %s31
      %s33 = sphi 0, %s31
      %s34 = sphi 0, %s33
      %s48 = sphi 0, %s34
      %s52 = sphi 0, %s52
      %s54 = sphi 0, %s52
      %s55 = sphi 0, %s54
      %s69 = sphi 0, %s55
      %s75 = sphi 0, %s77
      %s78 = sphi 0, %s75
      %s79 = sphi 0, %s78
      %s95 = sphi 0, %s79
    $region4: #{tpu_custom_call.1} parent=1 // loop_header_branch
      %14 = sbr.rel (%p12) target = $region8
    $region5: #{tpu_custom_call.1} parent=1 // loop_body
      %s16 = ssub.s32 %s11, 1
      %s17 = ssub.s32 %s11, 2
      %s24 = sadd.s32 1, %s19
      %p25 = scmp.ge.s32.totalorder %s24, 2
      %s26 = scalar_select %p25, 0, %s24
      %s27 = sadd.s32 1, %s18
      %s28 = scalar_select %p25, %s27, %s18
      %p29 = scmp.ge.s32.totalorder %s28, 1
      %s30 = scalar_select %p29, 0, %s28
      %s32 = sadd.s32 %s31, 1
      %p35 = scmp.eq.s32.totalorder %s11, 1
      %p36 = scmp.ne.s32.totalorder %s31, %s33
      %p37 = scmp.eq.s32.totalorder %s11, 0
      %p38 = por %p36, %p37
      %p39 = scmp.ne.s32.totalorder %s31, %s33
      %p40 = scmp.eq.s32.totalorder %s16, 1
      %p41 = por %p39, %p40
      %p42 = scmp.ne.s32.totalorder %s33, %s34
      %p43 = scmp.eq.s32.totalorder %s16, 0
      %p44 = por %p42, %p43
      %p45 = scmp.ne.s32.totalorder %s33, %s34
      %p46 = scmp.eq.s32.totalorder %s17, 1
      %p47 = por %p45, %p46
      %p49 = scmp.ne.s32.totalorder %s34, %s48
      %p50 = scmp.eq.s32.totalorder %s17, 0
      %p51 = por %p49, %p50
      %s53 = sadd.s32 %s52, 1
      %p56 = scmp.eq.s32.totalorder %s11, 1
      %p57 = scmp.ne.s32.totalorder %s52, %s54
      %p58 = scmp.eq.s32.totalorder %s11, 0
      %p59 = por %p57, %p58
      %p60 = scmp.ne.s32.totalorder %s52, %s54
      %p61 = scmp.eq.s32.totalorder %s16, 1
      %p62 = por %p60, %p61
      %p63 = scmp.ne.s32.totalorder %s54, %s55
      %p64 = scmp.eq.s32.totalorder %s16, 0
      %p65 = por %p63, %p64
      %p66 = scmp.ne.s32.totalorder %s54, %s55
      %p67 = scmp.eq.s32.totalorder %s17, 1
      %p68 = por %p66, %p67
      %p70 = scmp.ne.s32.totalorder %s55, %s69
      %p71 = scmp.eq.s32.totalorder %s17, 0
      %p72 = por %p70, %p71
      %s73 = ssub.s32 %s18, %s30
      %p74 = scmp.eq.s32.totalorder %s73, 0
      %s76 = sadd.s32 %s75, 1
      %s77 = scalar_select %p74, %s75, %s76
      %p80 = pneg %p74
      %p81 = scmp.eq.s32.totalorder %s11, 1
      %p82 = por %p80, %p81
      %p83 = scmp.ne.s32.totalorder %s75, %s78
      %p84 = scmp.eq.s32.totalorder %s11, 0
      %p85 = por %p83, %p84
      %p86 = scmp.ne.s32.totalorder %s75, %s78
      %p87 = scmp.eq.s32.totalorder %s16, 1
      %p88 = por %p86, %p87
      %p89 = scmp.ne.s32.totalorder %s78, %s79
      %p90 = scmp.eq.s32.totalorder %s16, 0
      %p91 = por %p89, %p90
      %p92 = scmp.ne.s32.totalorder %s78, %s79
      %p93 = scmp.eq.s32.totalorder %s17, 1
      %p94 = por %p92, %p93
      %p96 = scmp.ne.s32.totalorder %s79, %s95
      %p97 = scmp.eq.s32.totalorder %s17, 0
      %p98 = por %p96, %p97
      %p99 = scmp.le.s32.totalorder 1, %s11
      %p100 = scmp.lt.s32.totalorder %s11, 3
      %p101 = pnand %p99, %p100
      %p102 = pneg %p101
      // Predicated region
      $region9: #{tpu_custom_call.1} parent=5 // pred_check
        _
      $region10: #{tpu_custom_call.1} parent=5 // pred_check_branch
        %104 = sbr.rel (%p101) target = $region12
      $region11: #{tpu_custom_call.1} parent=5 // pred_region
        %s105 = ssub.s32 %s11, 1
        // Predicated region
        $region13: #{tpu_custom_call.1} parent=11 // pred_check
          %p106 = pneg %p44
        $region14: #{tpu_custom_call.1} parent=11 // pred_check_branch
          %108 = sbr.rel (%p106) target = $region16
        $region15: #{tpu_custom_call.1} parent=11 // pred_region
          %s110 = ssub.s32 256, 256
          %111 = vsyncadd [#allocation5], %s110
          %s112 = sshll.u32 [#allocation4], 4
          %s113 = int_to_ptr.vmem [resolvable:$true] %s112
          %118 = dma.hbm_to_vmem [thread:$0]  %s0, 256, %s113, [#allocation5], 128, 128, 8
        $region16: #{tpu_custom_call.1} parent=11 // pred_fallthru
          _
        // Predicated region
        $region17: #{tpu_custom_call.1} parent=11 // pred_check
          %p119 = pneg %p65
        $region18: #{tpu_custom_call.1} parent=11 // pred_check_branch
          %121 = sbr.rel (%p119) target = $region20
        $region19: #{tpu_custom_call.1} parent=11 // pred_region
          %s123 = ssub.s32 128, 128
          %124 = vsyncadd [#allocation8], %s123
          %s126 = sshll.u32 [#allocation7], 4
          %s127 = int_to_ptr.vmem [resolvable:$true] %s126
          %129 = dma.hbm_to_vmem [thread:$0]  %s1, 128, %s127, [#allocation8]
        $region20: #{tpu_custom_call.1} parent=11 // pred_fallthru
          _
      $region12: #{tpu_custom_call.1} parent=5 // pred_fallthru
        _
      %p130 = scmp.lt.s32.totalorder %s11, 2
      // Predicated region
      $region21: #{tpu_custom_call.1} parent=5 // pred_check
        %p131 = pneg %p130
      $region22: #{tpu_custom_call.1} parent=5 // pred_check_branch
        %133 = sbr.rel (%p131) target = $region24
      $region23: #{tpu_custom_call.1} parent=5 // pred_region
        _
      $region24: #{tpu_custom_call.1} parent=5 // pred_fallthru
        _
      %p134 = scmp.le.s32.totalorder 1, %s11
      %p135 = scmp.lt.s32.totalorder %s11, 3
      %p136 = pnand %p134, %p135
      %p137 = pneg %p136
      // Predicated region
      $region25: #{tpu_custom_call.1} parent=5 // pred_check
        _
      $region26: #{tpu_custom_call.1} parent=5 // pred_check_branch
        %139 = sbr.rel (%p136) target = $region28
      $region27: #{tpu_custom_call.1} parent=5 // pred_region
        %s140 = ssub.s32 %s11, 1
        // Predicated region
        $region29: #{tpu_custom_call.1} parent=27 // pred_check
          %p141 = pneg %p44
        $region30: #{tpu_custom_call.1} parent=27 // pred_check_branch
          %143 = sbr.rel (%p141) target = $region32
        $region31: #{tpu_custom_call.1} parent=27 // pred_region
          %144 = dma.done [#allocation5], 256
        $region32: #{tpu_custom_call.1} parent=27 // pred_fallthru
          _
        // Predicated region
        $region33: #{tpu_custom_call.1} parent=27 // pred_check
          %p145 = pneg %p65
        $region34: #{tpu_custom_call.1} parent=27 // pred_check_branch
          %147 = sbr.rel (%p145) target = $region36
        $region35: #{tpu_custom_call.1} parent=27 // pred_region
          %148 = dma.done [#allocation8], 128
        $region36: #{tpu_custom_call.1} parent=27 // pred_fallthru
          _
        %p149 = pneg %p44
        %p150 = pneg %p41
        %p151 = pneg %p65
        %p152 = pneg %p62
        %p153 = pneg %p91
        %p154 = pneg %p88
        %s155 = smul.u32 %s20, 8
        %s156 = smul.u32 %s21, 8
        %s157 = sadd.s32 %s156, %s155
        %s158 = scalar_lea.vmem [#allocation4], %s156
        %v159 = vld [vmem:[%s158] sm:$0xff]
        %s160 = scalar_lea.vmem [#allocation4], %s157
        %v161 = vld [vmem:[%s160] sm:$0xff]
        %vm162 = vcmask 130048
        %v164 = vsel %vm162, %v161, 0
        %v167 = vsel %vm162, %v159, 0
        %169 = vmatprep.subr.mxu0 0.0
        %170 = vmatpush1.xpose.msra.mxu0 0.0
        %171 = vmatprep.subr.mxu0 0.0
        %172 = vmatpush1.xpose.msra.mxu0 0.0
        %173 = vmatprep.subr.mxu0 0.0
        %174 = vmatpush1.xpose.msra.mxu0 0.0
        %175 = vmatprep.subr.mxu0 0.0
        %176 = vmatpush1.xpose.msra.mxu0 0.0
        %177 = vmatprep.subr.mxu0 0.0
        %178 = vmatpush1.xpose.msra.mxu0 0.0
        %179 = vmatprep.subr.mxu0 0.0
        %180 = vmatpush1.xpose.msra.mxu0 0.0
        %181 = vmatprep.subr.mxu0 0.0
        %182 = vmatpush1.xpose.msra.mxu0 0.0
        %183 = vmatprep.subr.mxu0 0.0
        %184 = vmatpush1.xpose.msra.mxu0 0.0
        %185 = vmatprep.subr.mxu0 0.0
        %186 = vmatpush1.xpose.msra.mxu0 0.0
        %187 = vmatprep.subr.mxu0 0.0
        %188 = vmatpush1.xpose.msra.mxu0 0.0
        %189 = vmatprep.subr.mxu0 0.0
        %190 = vmatpush1.xpose.msra.mxu0 0.0
        %191 = vmatprep.subr.mxu0 0.0
        %192 = vmatpush1.xpose.msra.mxu0 0.0
        %193 = vmatprep.subr.mxu0 0.0
        %194 = vmatpush1.xpose.msra.mxu0 0.0
        %195 = vmatprep.subr.mxu0 0.0
        %196 = vmatpush1.xpose.msra.mxu0 0.0
        %197 = vmatprep.subr.mxu0 0.0
        %198 = vmatpush1.xpose.msra.mxu0 0.0
        %199 = vmatprep.subr.mxu0 0.0
        %200 = vmatpush1.xpose.msra.mxu0 %v167
        %201 = vmatprep.subr.mxu0 0.0
        %202 = vmatpush2.xpose.msra.mxu0 0.0
        %203 = vmatprep.subr.mxu0 0.0
        %204 = vmatpush2.xpose.msra.mxu0 0.0
        %205 = vmatprep.subr.mxu0 0.0
        %206 = vmatpush2.xpose.msra.mxu0 0.0
        %207 = vmatprep.subr.mxu0 0.0
        %208 = vmatpush2.xpose.msra.mxu0 0.0
        %209 = vmatprep.subr.mxu0 0.0
        %210 = vmatpush2.xpose.msra.mxu0 0.0
        %211 = vmatprep.subr.mxu0 0.0
        %212 = vmatpush2.xpose.msra.mxu0 0.0
        %213 = vmatprep.subr.mxu0 0.0
        %214 = vmatpush2.xpose.msra.mxu0 0.0
        %215 = vmatprep.subr.mxu0 0.0
        %216 = vmatpush2.xpose.msra.mxu0 0.0
        %217 = vmatprep.subr.mxu0 0.0
        %218 = vmatpush2.xpose.msra.mxu0 0.0
        %219 = vmatprep.subr.mxu0 0.0
        %220 = vmatpush2.xpose.msra.mxu0 0.0
        %221 = vmatprep.subr.mxu0 0.0
        %222 = vmatpush2.xpose.msra.mxu0 0.0
        %223 = vmatprep.subr.mxu0 0.0
        %224 = vmatpush2.xpose.msra.mxu0 0.0
        %225 = vmatprep.subr.mxu0 0.0
        %226 = vmatpush2.xpose.msra.mxu0 0.0
        %227 = vmatprep.subr.mxu0 0.0
        %228 = vmatpush2.xpose.msra.mxu0 0.0
        %229 = vmatprep.subr.mxu0 0.0
        %230 = vmatpush2.xpose.msra.mxu0 0.0
        %231 = vmatprep.subr.mxu0 0.0
        %232 = vmatpush2.xpose.msra.mxu0 0.0
        %233 = vmatprep.mubr.f32.mxu0 0.0
        %234 = vmatmul.mubr.f32.gmra.mxu0 %v164
        %v235 = vpop.f32.mrf.mxu0
        %v236 = vadd.f32 0.0, %v235
        %v237 = vpop.f32.mrf.mxu0
        %238 = vdwg.mxu0
        %v239 = vlaneseq
        %v240 = vand.u32 %v239, 127
        %v241 = vlaneseq
        %v242 = vshrl.u32 %v241, 7
        %v243 = vstv %s155
        %v244 = vadd.s32 %v242, %v243
        %vm245 = vcmp.ne.s32.totalorder %v240, %v244
        %vm246 = vcmask 64512
        %v247 = vsel %vm246, %v236, -inf
        %248 = vmax.xlane.f32.xlu0 %v247
        %v249 = vpop.xlane.xlu0 %248
        %v250 = vsub.f32 %v236, %v249
        %v251 = vmul.f32 %v250, 1.442695
        %v252 = vpow.pop %v251
        %v253 = vsel %vm245, %v252, 0.0
        %v254 = vsel %vm246, %v253, 0.0
        %255 = vadd.xlane.f32.xlu0 %v254
        %v256 = vpop.xlane.xlu0 %255
        %v257 = vlog2.pop %v256
        %v258 = vmul.f32 %v257, 0.6931472
        %v259 = vadd.f32 %v249, %v258
        %p260 = scmp.eq.s32.totalorder %s21, 0
        // Predicated region
        $region37: #{tpu_custom_call.1} parent=27 // pred_check
          %p261 = pneg %p260
        $region38: #{tpu_custom_call.1} parent=27 // pred_check_branch
          %263 = sbr.rel (%p261) target = $region40
        $region39: #{tpu_custom_call.1} parent=27 // pred_region
          %264 = vst.msk [vmem:[#allocation2] sm:$0xff] %vm246, %v236
          %265 = vst.msk [vmem:[#allocation3] sm:$0xff] %vm246, %v259
        $region40: #{tpu_custom_call.1} parent=27 // pred_fallthru
          _
        %p266 = scmp.gt.s32.totalorder %s21, 0
        // Predicated region
        $region41: #{tpu_custom_call.1} parent=27 // pred_check
          %p267 = pneg %p266
        $region42: #{tpu_custom_call.1} parent=27 // pred_check_branch
          %269 = sbr.rel (%p267) target = $region44
        $region43: #{tpu_custom_call.1} parent=27 // pred_region
          %v270 = vld [vmem:[#allocation2] sm:$0xff]
          %vm271 = vcmp.gt.f32.partialorder %v236, %v270
          %v272 = vsel %vm271, %v236, %v270
          %273 = vst.msk [vmem:[#allocation2] sm:$0xff] %vm246, %v272
          %v274 = vld [vmem:[#allocation3] sm:$0xff]
          %v275 = vsel %vm271, %v259, %v274
          %276 = vst.msk [vmem:[#allocation3] sm:$0xff] %vm246, %v275
        $region44: #{tpu_custom_call.1} parent=27 // pred_fallthru
          _
        %p277 = scmp.eq.s32.totalorder %s21, 1
        // Predicated region
        $region45: #{tpu_custom_call.1} parent=27 // pred_check
          %p278 = pneg %p277
        $region46: #{tpu_custom_call.1} parent=27 // pred_check_branch
          %280 = sbr.rel (%p278) target = $region48
        $region47: #{tpu_custom_call.1} parent=27 // pred_region
          %v281 = vld [vmem:[#allocation7] sm:$0xff]
          %s282 = scalar_lea.vmem [#allocation7], %s155
          %v283 = vld [vmem:[%s282] sm:$0xff]
          %vm284 = vcmask 48128
          %v286 = vsel %vm284, %v283, 0
          %v289 = vsel %vm284, %v281, 0
          %291 = vmatprep.subr.mxu0 0.0
          %292 = vmatpush1.xpose.msra.mxu0 0.0
          %293 = vmatprep.subr.mxu0 0.0
          %294 = vmatpush1.xpose.msra.mxu0 0.0
          %295 = vmatprep.subr.mxu0 0.0
          %296 = vmatpush1.xpose.msra.mxu0 0.0
          %297 = vmatprep.subr.mxu0 0.0
          %298 = vmatpush1.xpose.msra.mxu0 0.0
          %299 = vmatprep.subr.mxu0 0.0
          %300 = vmatpush1.xpose.msra.mxu0 0.0
          %301 = vmatprep.subr.mxu0 0.0
          %302 = vmatpush1.xpose.msra.mxu0 0.0
          %303 = vmatprep.subr.mxu0 0.0
          %304 = vmatpush1.xpose.msra.mxu0 0.0
          %305 = vmatprep.subr.mxu0 0.0
          %306 = vmatpush1.xpose.msra.mxu0 0.0
          %307 = vmatprep.subr.mxu0 0.0
          %308 = vmatpush1.xpose.msra.mxu0 0.0
          %309 = vmatprep.subr.mxu0 0.0
          %310 = vmatpush1.xpose.msra.mxu0 0.0
          %311 = vmatprep.subr.mxu0 0.0
          %312 = vmatpush1.xpose.msra.mxu0 0.0
          %313 = vmatprep.subr.mxu0 0.0
          %314 = vmatpush1.xpose.msra.mxu0 0.0
          %315 = vmatprep.subr.mxu0 0.0
          %316 = vmatpush1.xpose.msra.mxu0 0.0
          %317 = vmatprep.subr.mxu0 0.0
          %318 = vmatpush1.xpose.msra.mxu0 0.0
          %319 = vmatprep.subr.mxu0 0.0
          %320 = vmatpush1.xpose.msra.mxu0 0.0
          %321 = vmatprep.subr.mxu0 0.0
          %322 = vmatpush1.xpose.msra.mxu0 %v289
          %323 = vmatprep.subr.mxu0 0.0
          %324 = vmatpush2.xpose.msra.mxu0 0.0
          %325 = vmatprep.subr.mxu0 0.0
          %326 = vmatpush2.xpose.msra.mxu0 0.0
          %327 = vmatprep.subr.mxu0 0.0
          %328 = vmatpush2.xpose.msra.mxu0 0.0
          %329 = vmatprep.subr.mxu0 0.0
          %330 = vmatpush2.xpose.msra.mxu0 0.0
          %331 = vmatprep.subr.mxu0 0.0
          %332 = vmatpush2.xpose.msra.mxu0 0.0
          %333 = vmatprep.subr.mxu0 0.0
          %334 = vmatpush2.xpose.msra.mxu0 0.0
          %335 = vmatprep.subr.mxu0 0.0
          %336 = vmatpush2.xpose.msra.mxu0 0.0
          %337 = vmatprep.subr.mxu0 0.0
          %338 = vmatpush2.xpose.msra.mxu0 0.0
          %339 = vmatprep.subr.mxu0 0.0
          %340 = vmatpush2.xpose.msra.mxu0 0.0
          %341 = vmatprep.subr.mxu0 0.0
          %342 = vmatpush2.xpose.msra.mxu0 0.0
          %343 = vmatprep.subr.mxu0 0.0
          %344 = vmatpush2.xpose.msra.mxu0 0.0
          %345 = vmatprep.subr.mxu0 0.0
          %346 = vmatpush2.xpose.msra.mxu0 0.0
          %347 = vmatprep.subr.mxu0 0.0
          %348 = vmatpush2.xpose.msra.mxu0 0.0
          %349 = vmatprep.subr.mxu0 0.0
          %350 = vmatpush2.xpose.msra.mxu0 0.0
          %351 = vmatprep.subr.mxu0 0.0
          %352 = vmatpush2.xpose.msra.mxu0 0.0
          %353 = vmatprep.subr.mxu0 0.0
          %354 = vmatpush2.xpose.msra.mxu0 0.0
          %355 = vmatprep.mubr.f32.mxu0 0.0
          %356 = vmatmul.mubr.f32.gmra.mxu0 %v286
          %v357 = vpop.f32.mrf.mxu0
          %v358 = vadd.f32 0.0, %v357
          %v359 = vpop.f32.mrf.mxu0
          %360 = vdwg.mxu0
          %vm361 = vcmp.gt.f32.partialorder %v358, 0.0
          %vm362 = vmand %vm361, %vm245
          %v363 = vsel %vm362, 1.0, 0.0
          %v364 = vld [vmem:[#allocation2] sm:$0xff]
          %v365 = vld [vmem:[#allocation3] sm:$0xff]
          %v366 = vsub.f32 %v364, %v365
          %v367 = vmul.f32 %v363, %v366
          %v368 = vsel %vm246, %v367, 0.0
          %369 = vadd.xlane.f32.xlu0 %v368
          %v370 = vpop.xlane.xlu0 %369
          %v371 = vsel %vm246, %v363, 0.0
          %372 = vadd.xlane.f32.xlu0 %v371
          %v373 = vpop.xlane.xlu0 %372
          %v374 = vrcp.pop %v373
          %v375 = vmul.f32 %v370, %v374
          %v376 = vmul.f32 %v375, -1.0
          %v378 = vlaneseq
          %v379 = vshrl.u32 %v378, 7
          %v380 = vsub.s32 %v240, %v379
          %v381 = vrot.slane %v376, %v380
          %vm383 = vcmask 57344
          %384 = vst.msk [vmem:[#allocation9] sm:$0x1] %vm383, %v381
        $region48: #{tpu_custom_call.1} parent=27 // pred_fallthru
          _
        // Predicated region
        $region49: #{tpu_custom_call.1} parent=27 // pred_check
          %p385 = pneg %p88
        $region50: #{tpu_custom_call.1} parent=27 // pred_check_branch
          %387 = sbr.rel (%p385) target = $region52
        $region51: #{tpu_custom_call.1} parent=27 // pred_region
          %s389 = ssub.s32 16, 16
          %390 = vsyncadd [#allocation6], %s389
          %s391 = smul.addr %s20, 16
          %s392 = scalar_lea.hbm %s2, %s391
          %s394 = sshll.u32 [#allocation9], 4
          %s395 = int_to_ptr.vmem [resolvable:$true] %s394
          %397 = dma.vmem_to_hbm [thread:$0]  %s395, 16, %s392, [#allocation6]
        $region52: #{tpu_custom_call.1} parent=27 // pred_fallthru
          _
        // Predicated region
        $region53: #{tpu_custom_call.1} parent=27 // pred_check
          %p398 = pneg %p88
        $region54: #{tpu_custom_call.1} parent=27 // pred_check_branch
          %400 = sbr.rel (%p398) target = $region56
        $region55: #{tpu_custom_call.1} parent=27 // pred_region
          %401 = dma.done [#allocation6], 16
        $region56: #{tpu_custom_call.1} parent=27 // pred_fallthru
          _
      $region28: #{tpu_custom_call.1} parent=5 // pred_fallthru
        _
      %p402 = scmp.le.s32.totalorder 2, %s11
      // Predicated region
      $region57: #{tpu_custom_call.1} parent=5 // pred_check
        %p403 = pneg %p402
      $region58: #{tpu_custom_call.1} parent=5 // pred_check_branch
        %405 = sbr.rel (%p403) target = $region60
      $region59: #{tpu_custom_call.1} parent=5 // pred_region
        %s406 = ssub.s32 %s11, 2
      $region60: #{tpu_custom_call.1} parent=5 // pred_fallthru
        _
    $region6: #{tpu_custom_call.1} parent=1 // loop_footer
      %s15 = sadd.s32 1, %s11
    $region7: #{tpu_custom_call.1} parent=1 // loop_footer_branch
      %10 = sbr.rel target = $region3
    $region8: #{tpu_custom_call.1} parent=1 // loop_exit
      _
    %407 = vsyncpa [#allocation5], 1
    %s408 = scalar_lea.sflag [#allocation5], 1
    %409 = vsyncpa %s408, 1
    %410 = vsyncpa [#allocation8], 1
    %411 = vsyncpa [#allocation6], 1
    %s412 = scalar_lea.sflag [#allocation6], 1
    %413 = vsyncpa %s412, 1

</llo_original>
